<compile_context>
chip_gen: v6e
topology: v6e:2x2x1
jax: 0.10.0
libtpu: 0.0.40
codegen_flags: <defaults>
</compile_context>

<pallas_src>
import functools

import jax
import jax.numpy as jnp
from jax.experimental import pallas as pl
from jax.experimental.pallas import tpu as pltpu

LANES = 128
SUBLANES = 8
MAX_ROW_TILE = 8192   # 8192 x 128 f32 = 4 MiB per block (2 MiB for bf16)
NUM_SLICES = 2        # leading 'parallel' grid axis (one slice per TC on v7x)


def _elem_loss(x, gan_type, target_val, sign):
    """Element-wise GAN loss in f32 (mean reduction applied by the caller)."""
    x = x.astype(jnp.float32)
    if gan_type == "vanilla":
        # BCEWithLogitsLoss, numerically stable:
        #   max(x, 0) - x*t + log1p(exp(-|x|))
        sp = jnp.log1p(jnp.exp(-jnp.abs(x)))
        if target_val == 1.0:
            return jnp.maximum(-x, 0.0) + sp
        if target_val == 0.0:
            return jnp.maximum(x, 0.0) + sp
        return jnp.maximum(x, 0.0) - x * jnp.float32(target_val) + sp
    if gan_type == "lsgan":
        d = x - jnp.float32(target_val)
        return d * d
    if gan_type == "wgan-gp":
        # loss = -mean(x) if target_is_real else mean(x); sign folded in.
        return x * jnp.float32(sign)
    raise NotImplementedError("GAN type [{:s}] is not found".format(gan_type))


def _gan_loss_kernel(x_ref, out_ref, acc_ref, *, gan_type, target_val, sign,
                     rows_valid, row_tile, steps_per_slice):
    p = pl.program_id(0)          # parallel slice (a TensorCore on v7x)
    k = pl.program_id(1)          # reduction step within this slice

    @pl.when(k == 0)
    def _():
        acc_ref[...] = jnp.zeros_like(acc_ref)

    # Stream the block in its native dtype; cast + loss in f32 on the VPU/EUP.
    v = _elem_loss(x_ref[...], gan_type, target_val, sign)   # (row_tile, 128)

    def fold(u):
        # (row_tile, 128) -> (8, 128): layout-free reshape + vreg adds (VPU),
        # one accumulator vreg store per step instead of a full-tile RMW.
        return jnp.sum(u.reshape(row_tile // SUBLANES, SUBLANES, LANES), axis=0)

    # Valid rows remaining for this block (scalar unit; rows_valid is static).
    rem = rows_valid - (p * steps_per_slice + k) * row_tile

    @pl.when(rem >= row_tile)          # interior blocks: no mask at all
    def _():
        acc_ref[...] += fold(v)

    @pl.when(rem < row_tile)           # last / duplicated block only
    def _():
        row_ids = jax.lax.broadcasted_iota(jnp.int32, v.shape, 0)
        acc_ref[...] += fold(jnp.where(row_ids < rem, v, 0.0))

    @pl.when(k == pl.num_programs(1) - 1)
    def _():
        out_ref[...] = acc_ref[...]    # lane-dense (8, 128) partial sum / slice


def gan_loss(x, target_is_real, gan_type,
             real_label_val=1.0, fake_label_val=0.0, row_tile=None):
    """JAX/Pallas equivalent of GANLoss(gan_type)(x, target_is_real)."""
    gan_type = gan_type.lower()
    n = x.size
    target_val = float(real_label_val if target_is_real else fake_label_val)
    sign = -1.0 if target_is_real else 1.0

    flat = jnp.ravel(x)

    # Rows streamed through the kernel: an (rows_kernel, 128) lane-dense slab
    # with rows_kernel a multiple of 8.  The leftover (< 8*128 + 128 elements)
    # is folded in wrapper-side, so no padded copy of the input is ever made.
    rows_kernel = ((n // LANES) // SUBLANES) * SUBLANES
    n_kernel = rows_kernel * LANES

    tail_sum = jnp.float32(0.0)
    if n_kernel < n:
        tail_sum = jnp.sum(_elem_loss(flat[n_kernel:], gan_type, target_val, sign))

    if rows_kernel == 0:
        total = tail_sum
    else:
        x2 = (flat if n_kernel == n else flat[:n_kernel]).reshape(rows_kernel, LANES)

        max_tile = MAX_ROW_TILE if row_tile is None else int(row_tile)
        assert max_tile % SUBLANES == 0
        tile = min(max_tile, rows_kernel)
        total_blocks = pl.cdiv(rows_kernel, tile)
        num_slices = NUM_SLICES if total_blocks >= NUM_SLICES else 1
        steps = pl.cdiv(total_blocks, num_slices)
        last_block = total_blocks - 1

        kernel = functools.partial(
            _gan_loss_kernel,
            gan_type=gan_type, target_val=target_val, sign=sign,
            rows_valid=rows_kernel, row_tile=tile, steps_per_slice=steps)

        def in_map(p, k):
            # Clamp so the grid never issues an out-of-bounds block DMA; a
            # duplicated block is zeroed in-kernel via the `rem` mask.
            return (jnp.minimum(p * steps + k, last_block), 0)

        partials = pl.pallas_call(
            kernel,
            out_shape=jax.ShapeDtypeStruct((num_slices * SUBLANES, LANES),
                                           jnp.float32),
            grid_spec=pltpu.PrefetchScalarGridSpec(
                num_scalar_prefetch=0,
                grid=(num_slices, steps),
                in_specs=[pl.BlockSpec((tile, LANES), in_map)],
                out_specs=pl.BlockSpec((SUBLANES, LANES), lambda p, k: (p, 0)),
                scratch_shapes=[pltpu.VMEM((SUBLANES, LANES), jnp.float32)],
            ),
            compiler_params=pltpu.CompilerParams(
                dimension_semantics=("parallel", "arbitrary"),
                vmem_limit_bytes=32 * 1024 * 1024,
            ),
        )(x2)

        total = jnp.sum(partials) + tail_sum

    # Mean over the *real* element count (matches torch reduction='mean').
    return (total / jnp.float32(n)).astype(jnp.float32)


def _reference(x, target_is_real, gan_type, real=1.0, fake=0.0):
    x = x.astype(jnp.float32)
    if gan_type == "wgan-gp":
        return -jnp.mean(x) if target_is_real else jnp.mean(x)
    t = jnp.full_like(x, real if target_is_real else fake)
    if gan_type == "lsgan":
        return jnp.mean((x - t) ** 2)
    # vanilla: BCE with logits (stable form)
    return jnp.mean(jnp.maximum(x, 0.0) - x * t + jnp.log1p(jnp.exp(-jnp.abs(x))))


def _check(x, gan_type, target_is_real, tag, tol=1e-5, **kw):
    out = jax.block_until_ready(gan_loss(x, target_is_real, gan_type, **kw))
    ref = _reference(x, target_is_real, gan_type)
    if not jnp.allclose(out, ref, atol=tol, rtol=tol):
        print(f"MISMATCH [{tag}] {gan_type} real={target_is_real}: {out} vs {ref}")
        return False
    return True


if __name__ == "__main__":
    ok = True

    # Discriminator-logit-like input: NCHW [2, 4, 16, 16] (n divisible by 128).
    x = jax.random.normal(jax.random.PRNGKey(0), (2, 4, 16, 16), dtype=jnp.float32)
    for gt in ("vanilla", "lsgan", "wgan-gp"):
        for real in (True, False):
            ok &= _check(x, gt, real, "aligned")

    # Ragged shape (n % 1024 != 0) exercises the wrapper-side tail correction.
    xr = jax.random.normal(jax.random.PRNGKey(1), (3, 5, 7, 11), dtype=jnp.float32)
    for gt in ("vanilla", "lsgan", "wgan-gp"):
        for real in (True, False):
            ok &= _check(xr, gt, real, "ragged")

    # bf16 discriminator output streamed natively (per-tile cast in VMEM).
    xb = jax.random.normal(jax.random.PRNGKey(2), (2, 4, 16, 16)).astype(jnp.bfloat16)
    ok &= _check(xb, "vanilla", True, "bf16", tol=1e-4)

    # Small-shape exercise of the multi-block paths via a tiny row tile:
    #   * tile=8  -> 3 blocks, 2 parallel slices, one clamped duplicate block
    #   * tile=16 -> 2 blocks, 2 parallel slices, partial last block (masked)
    xm = jax.random.normal(jax.random.PRNGKey(3), (2, 4, 24, 16), dtype=jnp.float32)
    for tile in (8, 16):
        for gt in ("vanilla", "lsgan"):
            for real in (True, False):
                ok &= _check(xm, gt, real, f"multiblock tile={tile}", row_tile=tile)

    if ok:
        print("KERNEL_OK")
</pallas_src>

<mosaic_0001>
module attributes {stable_mosaic.version = 11 : i64} {
  func.func @_gan_loss_kernel(%arg0: i32, %arg1: i32, %arg2: memref<16x128xf32, #tpu.memory_space<vmem>>, %arg3: memref<8x128xf32, #tpu.memory_space<vmem>>, %arg4: memref<8x128xf32, #tpu.memory_space<vmem>>) attributes {dimension_semantics = [#tpu.dimension_semantics<parallel>, #tpu.dimension_semantics<arbitrary>], iteration_bounds = array<i64: 1, 1>, scalar_prefetch = 0 : i64, scratch_operands = 1 : i64, tpu.core_type = #tpu.core_type<tc>, window_params = [{transform_indices = @transform_0, window_bounds = array<i64: 16, 128>}, {transform_indices = @transform_1, window_bounds = array<i64: 8, 128>}]} {
    %c0_i32 = arith.constant 0 : i32
    %0 = arith.cmpi eq, %arg1, %c0_i32 : i32
    %1 = arith.extui %0 : i1 to i32
    %c0_i32_0 = arith.constant 0 : i32
    %2 = arith.cmpi ne, %1, %c0_i32_0 : i32
    scf.if %2 {
      %cst_11 = arith.constant 0.000000e+00 : f32
      %27 = vector.broadcast %cst_11 : f32 to vector<8x128xf32>
      %c0_12 = arith.constant 0 : index
      %c0_13 = arith.constant 0 : index
      %28 = vector.load %arg4[%c0_12, %c0_13] : memref<8x128xf32, #tpu.memory_space<vmem>>, vector<8x128xf32>
      tpu.vector_store %arg4[%c0_12, %c0_13], %27 {strides = array<i32>} : memref<8x128xf32, #tpu.memory_space<vmem>>, vector<8x128xf32>,
    } else {
    }
    %c0 = arith.constant 0 : index
    %c0_1 = arith.constant 0 : index
    %3 = vector.load %arg2[%c0, %c0_1] : memref<16x128xf32, #tpu.memory_space<vmem>>, vector<16x128xf32>
    %4 = math.absf %3 : vector<16x128xf32>
    %cst = arith.constant 0.000000e+00 : f32
    %5 = vector.broadcast %cst : f32 to vector<16x128xf32>
    %6 = arith.subf %5, %4 : vector<16x128xf32>
    %7 = math.exp %6 : vector<16x128xf32>
    %8 = math.log1p %7 : vector<16x128xf32>
    %cst_2 = arith.constant 0.000000e+00 : f32
    %9 = vector.broadcast %cst_2 : f32 to vector<16x128xf32>
    %10 = arith.subf %9, %3 : vector<16x128xf32>
    %cst_3 = arith.constant 0.000000e+00 : f32
    %11 = vector.broadcast %cst_3 : f32 to vector<16x128xf32>
    %12 = arith.maximumf %10, %11 : vector<16x128xf32>
    %13 = arith.addf %12, %8 : vector<16x128xf32>
    %c1_i32 = arith.constant 1 : i32
    %14 = arith.muli %arg0, %c1_i32 : i32
    %15 = arith.addi %14, %arg1 : i32
    %c16_i32 = arith.constant 16 : i32
    %16 = arith.muli %15, %c16_i32 : i32
    %c16_i32_4 = arith.constant 16 : i32
    %17 = arith.subi %c16_i32_4, %16 : i32
    %c16_i32_5 = arith.constant 16 : i32
    %18 = arith.cmpi sge, %17, %c16_i32_5 : i32
    %19 = arith.extui %18 : i1 to i32
    %c0_i32_6 = arith.constant 0 : i32
    %20 = arith.cmpi ne, %19, %c0_i32_6 : i32
    scf.if %20 {
      %c0_11 = arith.constant 0 : index
      %c0_12 = arith.constant 0 : index
      %27 = vector.load %arg4[%c0_11, %c0_12] : memref<8x128xf32, #tpu.memory_space<vmem>>, vector<8x128xf32>
      %28 = vector.shape_cast %13 : vector<16x128xf32> to vector<2x8x128xf32>
      %cst_13 = arith.constant dense<0.000000e+00> : vector<8x128xf32>
      %29 = vector.multi_reduction <add>, %28, %cst_13 [0] : vector<2x8x128xf32> to vector<8x128xf32>
      %30 = arith.addf %27, %29 : vector<8x128xf32>
      %c0_14 = arith.constant 0 : index
      %c0_15 = arith.constant 0 : index
      %31 = vector.load %arg4[%c0_14, %c0_15] : memref<8x128xf32, #tpu.memory_space<vmem>>, vector<8x128xf32>
      tpu.vector_store %arg4[%c0_14, %c0_15], %30 {strides = array<i32>} : memref<8x128xf32, #tpu.memory_space<vmem>>, vector<8x128xf32>,
    } else {
    }
    %c16_i32_7 = arith.constant 16 : i32
    %21 = arith.cmpi slt, %17, %c16_i32_7 : i32
    %22 = arith.extui %21 : i1 to i32
    %c0_i32_8 = arith.constant 0 : i32
    %23 = arith.cmpi ne, %22, %c0_i32_8 : i32
    scf.if %23 {
      %27 = tpu.iota {dimensions = array<i32: 0>} : vector<16x128xi32>
      %c0_11 = arith.constant 0 : index
      %c0_12 = arith.constant 0 : index
      %28 = vector.load %arg4[%c0_11, %c0_12] : memref<8x128xf32, #tpu.memory_space<vmem>>, vector<8x128xf32>
      %29 = vector.broadcast %17 : i32 to vector<16x128xi32>
      %30 = arith.cmpi slt, %27, %29 : vector<16x128xi32>
      %cst_13 = arith.constant 0.000000e+00 : f32
      %31 = vector.broadcast %cst_13 : f32 to vector<16x128xf32>
      %32 = arith.select %30, %13, %31 : vector<16x128xi1>, vector<16x128xf32>
      %33 = vector.shape_cast %32 : vector<16x128xf32> to vector<2x8x128xf32>
      %cst_14 = arith.constant dense<0.000000e+00> : vector<8x128xf32>
      %34 = vector.multi_reduction <add>, %33, %cst_14 [0] : vector<2x8x128xf32> to vector<8x128xf32>
      %35 = arith.addf %28, %34 : vector<8x128xf32>
      %c0_15 = arith.constant 0 : index
      %c0_16 = arith.constant 0 : index
      %36 = vector.load %arg4[%c0_15, %c0_16] : memref<8x128xf32, #tpu.memory_space<vmem>>, vector<8x128xf32>
      tpu.vector_store %arg4[%c0_15, %c0_16], %35 {strides = array<i32>} : memref<8x128xf32, #tpu.memory_space<vmem>>, vector<8x128xf32>,
    } else {
    }
    %c0_i32_9 = arith.constant 0 : i32
    %24 = arith.cmpi eq, %arg1, %c0_i32_9 : i32
    %25 = arith.extui %24 : i1 to i32
    %c0_i32_10 = arith.constant 0 : i32
    %26 = arith.cmpi ne, %25, %c0_i32_10 : i32
    scf.if %26 {
      %c0_11 = arith.constant 0 : index
      %c0_12 = arith.constant 0 : index
      %27 = vector.load %arg4[%c0_11, %c0_12] : memref<8x128xf32, #tpu.memory_space<vmem>>, vector<8x128xf32>
      %c0_13 = arith.constant 0 : index
      %c0_14 = arith.constant 0 : index
      %28 = vector.load %arg3[%c0_13, %c0_14] : memref<8x128xf32, #tpu.memory_space<vmem>>, vector<8x128xf32>
      tpu.vector_store %arg3[%c0_13, %c0_14], %27 {strides = array<i32>} : memref<8x128xf32, #tpu.memory_space<vmem>>, vector<8x128xf32>,
    } else {
    }
    return
  }
  func.func @transform_0(%arg0: i32, %arg1: i32) -> (i32, i32) {
    %c1_i32 = arith.constant 1 : i32
    %0 = arith.muli %arg0, %c1_i32 : i32
    %1 = arith.addi %0, %arg1 : i32
    %c0_i32 = arith.constant 0 : i32
    %2 = arith.minsi %1, %c0_i32 : i32
    %c0_i32_0 = arith.constant 0 : i32
    %c0_i32_1 = arith.constant 0 : i32
    return %2, %c0_i32_0 : i32, i32
  }
  func.func @transform_1(%arg0: i32, %arg1: i32) -> (i32, i32) {
    %c0_i32 = arith.constant 0 : i32
    %c0_i32_0 = arith.constant 0 : i32
    return %arg0, %c0_i32 : i32, i32
  }
}

</mosaic_0001>

<llo_original>
// kernel: tpu_custom_call.1
$region0: #{tpu_custom_call.1}
  #allocation0 [shape = 'u32[]', space=smem, size = 0x4, offset = 0x4, fixed_abs, tag = 'smem constant byte address 0x4 - core index']
  #allocation1 [shape = 'u32[144,128]{1,0:T(1,128)}', space=vmem, size = 0x12000, scoped, tag = 'internal scratch']
  #allocation2 [shape = 'f32[8,128]{1,0:T(8,128)}', space=vmem, size = 0x1000, scoped, tag = 'scratch operand']
  %s0 = inlined_call_operand.hbm [shape: f32[16,128], index: 0, kind: input, shape index: {}]
  %s1 = inlined_call_operand.hbm [shape: f32[8,128], index: 1, kind: output, shape index: {}]
  %s2 = sld [smem:[#allocation0]]
  $region34: #{tpu_custom_call.1} parent=0
    _
  %s4 = ssub.s32 1, %s2
  %s5 = scalar_select 0, %s4, %s2
  $region1: #{tpu_custom_call.1} parent=0
    #allocation3 [shape = 'u8[8192]{0}', space=vmem, size = 0x2000, scoped, tag = 'input window, operand 0, single buffered']
    #allocation4 [shape = 's32[1]{0}', space=sflag, size = 0x4, scoped, tag = 'scoped memory for tpu_custom_call.1']
    #allocation5 [shape = 's32[1]{0}', space=sflag, size = 0x4, scoped, tag = 'scoped memory for tpu_custom_call.1']
    #allocation6 [shape = 'u8[4096]{0}', space=vmem, size = 0x1000, scoped, tag = 'output window, operand 0, single buffered']
    %6 = vsyncpa [#allocation4], 0
    %7 = vsyncpa [#allocation5], 0
    // Predicated region
    $region2: #{tpu_custom_call.1} parent=1 // pred_check
      _
    $region3: #{tpu_custom_call.1} parent=1 // pred_check_branch
      %9 = sbr.rel (0) target = $region5
    $region4: #{tpu_custom_call.1} parent=1 // pred_region
      %s10 = sadd.s32 0, 0
      %p11 = scmp.lt.s32.totalorder %s10, 0
      %s12 = scalar_select %p11, %s10, 0
      %s13 = smul.u32 2, %s12
      %s15 = ssub.s32 256, 256
      %16 = vsyncadd [#allocation4], %s15
      %s17 = smul.addr %s13, 128
      %s18 = scalar_lea.hbm %s0, %s17
      %s19 = sshll.u32 [#allocation3], 4
      %s20 = int_to_ptr.vmem [resolvable:$true] %s19
      %25 = dma.hbm_to_vmem [thread:$0]  %s18, 256, %s20, [#allocation4], 128, 128, 8
    $region5: #{tpu_custom_call.1} parent=1 // pred_fallthru
      _
    // Predicated region
    $region6: #{tpu_custom_call.1} parent=1 // pred_check
      _
    $region7: #{tpu_custom_call.1} parent=1 // pred_check_branch
      %27 = sbr.rel (0) target = $region9
    $region8: #{tpu_custom_call.1} parent=1 // pred_region
      %28 = dma.done [#allocation4], 256
    $region9: #{tpu_custom_call.1} parent=1 // pred_fallthru
      _
    %s29 = sadd.s32 0, 0
    %p30 = scmp.lt.s32.totalorder %s29, 0
    %s31 = scalar_select %p30, %s29, 0
    %s32 = smul.u32 2, %s31
    %p33 = scmp.eq.s32.totalorder 0, 0
    // Predicated region
    $region10: #{tpu_custom_call.1} parent=1 // pred_check
      %p34 = pneg %p33
    $region11: #{tpu_custom_call.1} parent=1 // pred_check_branch
      %36 = sbr.rel (%p34) target = $region13
    $region12: #{tpu_custom_call.1} parent=1 // pred_region
      %37 = vst [vmem:[#allocation2] sm:$0xff] 0.0
    $region13: #{tpu_custom_call.1} parent=1 // pred_fallthru
      _
    %v38 = vld [vmem:[#allocation3] sm:$0xff]
    %v39 = vld [vmem:[#allocation3 + $0x8] sm:$0xff]
    %v40 = vand.u32 2147483647, %v38
    %v41 = vand.u32 2147483647, %v39
    %v42 = vsub.f32 0.0, %v40
    %v43 = vsub.f32 0.0, %v41
    %v44 = vmul.f32 %v42, 1.442695
    %v45 = vpow.pop %v44
    %v46 = vmul.f32 %v43, 1.442695
    %v47 = vpow.pop %v46
    %v48 = vadd.f32 %v45, 1.0
    %v49 = vlog2.pop %v48
    %v50 = vmul.f32 %v49, 0.6931472
    %v51 = vmul.f32 -0.5, %v45
    %v52 = vadd.f32 %v51, 1.0
    %v53 = vmul.f32 %v52, %v45
    %v54 = vand.u32 2147483647, %v45
    %vm55 = vcmp.lt.f32.partialorder %v54, 0.0004427343
    %v56 = vsel %vm55, %v53, %v50
    %v57 = vadd.f32 %v47, 1.0
    %v58 = vlog2.pop %v57
    %v59 = vmul.f32 %v58, 0.6931472
    %v60 = vmul.f32 -0.5, %v47
    %v61 = vadd.f32 %v60, 1.0
    %v62 = vmul.f32 %v61, %v47
    %v63 = vand.u32 2147483647, %v47
    %vm64 = vcmp.lt.f32.partialorder %v63, 0.0004427343
    %v65 = vsel %vm64, %v62, %v59
    %v66 = vsub.f32 0.0, %v38
    %v67 = vsub.f32 0.0, %v39
    %v68 = vmax.f32 %v66, 0.0
    %v69 = vmax.f32 %v67, 0.0
    %v70 = vadd.f32 %v68, %v56
    %v71 = vadd.f32 %v69, %v65
    %s72 = sadd.s32 0, 0
    %s73 = smul.u32 %s72, 16
    %s74 = ssub.s32 16, %s73
    %p75 = scmp.ge.s32.totalorder %s74, 16
    // Predicated region
    $region14: #{tpu_custom_call.1} parent=1 // pred_check
      %p76 = pneg %p75
    $region15: #{tpu_custom_call.1} parent=1 // pred_check_branch
      %78 = sbr.rel (%p76) target = $region17
    $region16: #{tpu_custom_call.1} parent=1 // pred_region
      %v79 = vld [vmem:[#allocation2] sm:$0xff]
      %v80 = vadd.f32 %v70, %v71
      %v81 = vadd.f32 %v79, %v80
      %82 = vst [vmem:[#allocation2] sm:$0xff] %v81
    $region17: #{tpu_custom_call.1} parent=1 // pred_fallthru
      _
    %p83 = scmp.lt.s32.totalorder %s74, 16
    // Predicated region
    $region18: #{tpu_custom_call.1} parent=1 // pred_check
      %p84 = pneg %p83
    $region19: #{tpu_custom_call.1} parent=1 // pred_check_branch
      %86 = sbr.rel (%p84) target = $region21
    $region20: #{tpu_custom_call.1} parent=1 // pred_region
      %v87 = vlaneseq
      %v88 = vshrl.u32 %v87, 7
      %v89 = vadd.s32 %v88, 8
      %v90 = vld [vmem:[#allocation2] sm:$0xff]
      %v91 = vstv %s74
      %vm92 = vcmp.lt.s32.totalorder %v88, %v91
      %vm93 = vcmp.lt.s32.totalorder %v89, %v91
      %v94 = vsel %vm92, %v70, 0.0
      %v95 = vsel %vm93, %v71, 0.0
      %v96 = vadd.f32 %v94, %v95
      %v97 = vadd.f32 %v90, %v96
      %98 = vst [vmem:[#allocation2] sm:$0xff] %v97
    $region21: #{tpu_custom_call.1} parent=1 // pred_fallthru
      _
    // Predicated region
    $region22: #{tpu_custom_call.1} parent=1 // pred_check
      %p99 = pneg %p33
    $region23: #{tpu_custom_call.1} parent=1 // pred_check_branch
      %101 = sbr.rel (%p99) target = $region25
    $region24: #{tpu_custom_call.1} parent=1 // pred_region
      %v102 = vld [vmem:[#allocation2] sm:$0xff]
      %103 = vst [vmem:[#allocation6] sm:$0xff] %v102
    $region25: #{tpu_custom_call.1} parent=1 // pred_fallthru
      _
    // Predicated region
    $region26: #{tpu_custom_call.1} parent=1 // pred_check
      _
    $region27: #{tpu_custom_call.1} parent=1 // pred_check_branch
      %105 = sbr.rel (0) target = $region29
    $region28: #{tpu_custom_call.1} parent=1 // pred_region
      %s107 = ssub.s32 128, 128
      %108 = vsyncadd [#allocation5], %s107
      %s110 = sshll.u32 [#allocation6], 4
      %s111 = int_to_ptr.vmem [resolvable:$true] %s110
      %113 = dma.vmem_to_hbm [thread:$0]  %s111, 128, %s1, [#allocation5]
    $region29: #{tpu_custom_call.1} parent=1 // pred_fallthru
      _
    // Predicated region
    $region30: #{tpu_custom_call.1} parent=1 // pred_check
      _
    $region31: #{tpu_custom_call.1} parent=1 // pred_check_branch
      %115 = sbr.rel (0) target = $region33
    $region32: #{tpu_custom_call.1} parent=1 // pred_region
      %116 = dma.done [#allocation5], 128
    $region33: #{tpu_custom_call.1} parent=1 // pred_fallthru
      _
    %117 = vsyncpa [#allocation4], 1
    %118 = vsyncpa [#allocation5], 1

</llo_original>
